<compile_context>
chip_gen: v7x
topology: tpu7x:2x2x1
jax: 0.10.0
libtpu: 0.0.40
codegen_flags: <defaults>
</compile_context>

<pallas_src>
import numpy as np
import jax
import jax.numpy as jnp
from jax import lax
from jax.experimental import pallas as pl
from jax.experimental.pallas import tpu as pltpu


# ---------------------------------------------------------------------------
# helpers
# ---------------------------------------------------------------------------
def _round_up(x, m):
    return ((x + m - 1) // m) * m


def _binom_vec(n):
    """[binom(n, k) for k in 0..n] as float64."""
    v = np.ones(n + 1, dtype=np.float64)
    for k in range(1, n + 1):
        v[k] = v[k - 1] * (n - k + 1) / k
    return v


def _tree_sum(vals):
    vals = list(vals)
    while len(vals) > 1:
        nxt = [vals[k] + vals[k + 1] for k in range(0, len(vals) - 1, 2)]
        if len(vals) % 2:
            nxt.append(vals[-1])
        vals = nxt
    return vals[0]


# ---------------------------------------------------------------------------
# fused Pallas kernel: full ReLUModule composition in one launch
# ---------------------------------------------------------------------------
def _make_relu_kernel(d0, d1, nz_terms, Mp, Np):
    """Kernel specialized on the input degree (d0, d1), the padded tile shape
    (Mp, Np) and the static list of (power, coefficient) nonzero terms
    (increasing power)."""
    w_in = np.outer(_binom_vec(d0), _binom_vec(d1))   # static input binomials

    def _conv(a, taps, ni, nj):
        # Full 2-D convolution of the zero-padded tile `a` with an (ni, nj)
        # tap grid.  taps(i, j) -> full-tile array (traced), python float, or
        # None for an exact 1.0.  Absolute rolls (all independent, XLU slot)
        # + per-row accumulators + tree-sum expose ILP; circular wrap-around
        # only brings zeros because every valid region stays inside (Mp, Np).
        row_accs = []
        for i in range(ni):
            a_i = a if i == 0 else pltpu.roll(a, shift=i, axis=0)   # sublane
            acc_i = None
            for j in range(nj):
                a_ij = a_i if j == 0 else pltpu.roll(a_i, shift=j, axis=1)  # lane
                m = taps(i, j)
                term = a_ij if m is None else m * a_ij
                acc_i = term if acc_i is None else acc_i + term
            row_accs.append(acc_i)
        return _tree_sum(row_accs)

    def kernel(x_sm, wc_ref, wr_ref, o_ref):
        # x_sm   : ((d0+1)*(d1+1),) SMEM f32 — raw input coeffs, row-major flat
        # wc_ref : (Mp, 1) VMEM — 1/binom(P*d0, i) for i < Mc, 0 in the pad
        # wr_ref : (1, Np) VMEM — 1/binom(P*d1, j) for j < Nc, 0 in the pad

        # --- pre-broadcast the weighted x taps ONCE (reused by every conv) ---
        taps = []
        for i in range(d0 + 1):
            row = []
            for j in range(d1 + 1):
                t = jnp.full((Mp, Np), x_sm[i * (d1 + 1) + j], dtype=jnp.float32)
                w = float(w_in[i, j])
                if w != 1.0:
                    t = w * t                     # fold binomial weighting in
                row.append(t)
            taps.append(row)

        def x_taps(i, j):
            return taps[i][j]

        # --- weighted x^0 == delta at (0, 0) on the zero-padded tile ---------
        rr = lax.broadcasted_iota(jnp.int32, (Mp, Np), 0)
        cc = lax.broadcasted_iota(jnp.int32, (Mp, Np), 1)
        cur = jnp.where((rr == 0) & (cc == 0), 1.0, 0.0).astype(jnp.float32)
        cur_p = 0

        # --- interleaved PowerModule chain + SumModule accumulation ----------
        const_val = 0.0          # pending power-0 (broadcast constant) term
        total = None             # weighted coeffs of the running total
        total_deg = (0, 0)
        for power, coef in nz_terms:
            if power == 0:
                const_val += coef
                continue
            while cur_p < power:                      # one conv per power step
                cur = _conv(cur, x_taps, d0 + 1, d1 + 1)
                cur_p += 1
            term = cur if coef == 1.0 else coef * cur
            deg = (power * d0, power * d1)
            if total is None:
                total = term
            else:
                diff = (deg[0] - total_deg[0], deg[1] - total_deg[1])
                if diff != (0, 0):
                    # SumModule degree elevation == conv with the static
                    # binomial taps of the degree difference.
                    w_diff = np.outer(_binom_vec(diff[0]), _binom_vec(diff[1]))

                    def ones_taps(i, j, _w=w_diff):
                        c = float(_w[i, j])
                        return None if c == 1.0 else c

                    total = _conv(total, ones_taps, diff[0] + 1, diff[1] + 1)
                total = total + term
            total_deg = deg

        # --- back to raw Bernstein coefficients (separable un-weighting) -----
        out = total * wc_ref[...] * wr_ref[...]
        if const_val != 0.0:
            out = out + jnp.float32(const_val)   # pad gets const too; wrapper slices
        o_ref[...] = out

    return kernel


def _build_fused_forward(d0, d1, nz_terms):
    """Build the jitted fused forward for an input of degree (d0, d1)."""
    P = nz_terms[-1][0]
    Mc, Nc = P * d0 + 1, P * d1 + 1                   # final coefficient shape
    Mp = _round_up(max(Mc, 8), 8)                     # sublane pad
    Np = _round_up(max(Nc, 128), 128)                 # lane-dense pad (>= 128)

    wc = np.zeros((Mp, 1), np.float32)
    wc[:Mc, 0] = 1.0 / _binom_vec(P * d0)
    wr = np.zeros((1, Np), np.float32)
    wr[0, :Nc] = 1.0 / _binom_vec(P * d1)
    wc_j = jnp.asarray(wc)
    wr_j = jnp.asarray(wr)

    call = pl.pallas_call(
        _make_relu_kernel(d0, d1, nz_terms, Mp, Np),
        out_shape=jax.ShapeDtypeStruct((Mp, Np), jnp.float32),
        in_specs=[
            pl.BlockSpec(memory_space=pltpu.MemorySpace.SMEM),   # flat raw x (scalars)
            pl.BlockSpec(memory_space=pltpu.MemorySpace.VMEM),   # winv column (Mp,1)
            pl.BlockSpec(memory_space=pltpu.MemorySpace.VMEM),   # winv row    (1,Np)
        ],
        out_specs=pl.BlockSpec(memory_space=pltpu.MemorySpace.VMEM),
    )

    @jax.jit
    def fused(x):
        x_flat = x.astype(jnp.float32).reshape(-1)
        out = call(x_flat, wc_j, wr_j)
        return out[:Mc, :Nc]

    return fused


# ---------------------------------------------------------------------------
# Module port (same forward-pass semantics as the PyTorch ReLUModule)
# ---------------------------------------------------------------------------
class ReLUModule:
    def __init__(self, dims, coefficients, degree):
        assert dims == 2, "Pallas kernel implements the dims == 2 case"
        self.dims = dims
        self.coefficients = np.asarray(coefficients, np.float32)
        self.degree = degree
        self._nz = [(p, float(c)) for p, c in enumerate(self.coefficients) if c != 0.0]
        self._cache = {}

    def forward(self, inputs):
        inputs = jnp.asarray(inputs, jnp.float32)
        assert inputs.ndim == 2, "dims == 2 only"
        if not self._nz:                              # torch.any(coefficients) False
            return jnp.zeros((1, 1), jnp.float32)
        P = self._nz[-1][0]
        d0, d1 = inputs.shape[0] - 1, inputs.shape[1] - 1
        if P == 0:                                    # only a constant term
            return jnp.full((1, 1), self._nz[-1][1], dtype=jnp.float32)
        if d0 == 0 and d1 == 0:                       # degenerate scalar polynomial
            x0 = inputs[0, 0]
            acc = jnp.float32(0.0)
            for p, c in self._nz:
                acc = acc + jnp.float32(c) * x0 ** p
            return acc.reshape(1, 1)
        key = (d0, d1)
        if key not in self._cache:
            self._cache[key] = _build_fused_forward(d0, d1, tuple(self._nz))
        return self._cache[key](inputs)

    __call__ = forward


# ---------------------------------------------------------------------------
# reference evaluation (numpy) for a sanity check
# ---------------------------------------------------------------------------
def _bern_eval_2d(coefs, s, t):
    coefs = np.asarray(coefs, np.float64)
    m, n = np.array(coefs.shape) - 1
    ks = np.arange(m + 1)
    kt = np.arange(n + 1)
    bs = _binom_vec(m) * (s ** ks) * ((1.0 - s) ** (m - ks))
    bt = _binom_vec(n) * (t ** kt) * ((1.0 - t) ** (n - kt))
    return float(bs @ coefs @ bt)


if __name__ == "__main__":
    dims = 2
    degree = 4  # (degree of input polynomial + 1 per original convention; unused in math)
    # polynomial surrogate coefficients: c0 + c1*x + c2*x^2 + c3*x^3
    coefficients = np.array([0.25, 0.5, 0.25, 0.05], dtype=np.float32)

    key = jax.random.PRNGKey(0)
    # Bernstein coefficient tensor of a degree-(3,3) bivariate polynomial
    x = jax.random.normal(key, (4, 4), dtype=jnp.float32)

    relu_mod = ReLUModule(dims, coefficients, degree)
    total = relu_mod.forward(x)
    total = jax.block_until_ready(total)

    # sanity check: eval(total)(s,t) == poly(coefficients)( eval(x)(s,t) )
    xs = np.asarray(x, np.float64)
    ts = np.asarray(total, np.float64)
    ok = True
    for s, t in [(0.0, 0.0), (0.3, 0.7), (1.0, 0.5), (0.9, 0.1), (0.5, 0.5)]:
        val_in = _bern_eval_2d(xs, s, t)
        expect = float(np.polyval(np.asarray(coefficients, np.float64)[::-1], val_in))
        got = _bern_eval_2d(ts, s, t)
        if not np.isclose(got, expect, rtol=1e-3, atol=1e-3):
            ok = False
    if not ok:
        raise AssertionError("Bernstein polynomial composition mismatch")

    print("KERNEL_OK")
</pallas_src>

<mosaic_0001>
module attributes {stable_mosaic.version = 11 : i64} {
  func.func @kernel(%arg0: memref<16xf32, #tpu.memory_space<smem>>, %arg1: memref<16x1xf32, #tpu.memory_space<vmem>>, %arg2: memref<1x128xf32, #tpu.memory_space<vmem>>, %arg3: memref<16x128xf32, #tpu.memory_space<vmem>>) attributes {dimension_semantics = [], scalar_prefetch = 0 : i64, scratch_operands = 0 : i64, tpu.core_type = #tpu.core_type<tc>} {
    %c0 = arith.constant 0 : index
    %0 = memref.load %arg0[%c0] : memref<16xf32, #tpu.memory_space<smem>>
    %1 = vector.broadcast %0 : f32 to vector<16x128xf32>
    %c1 = arith.constant 1 : index
    %2 = memref.load %arg0[%c1] : memref<16xf32, #tpu.memory_space<smem>>
    %3 = vector.broadcast %2 : f32 to vector<16x128xf32>
    %cst = arith.constant 3.000000e+00 : f32
    %4 = vector.broadcast %cst : f32 to vector<16x128xf32>
    %5 = arith.mulf %4, %3 : vector<16x128xf32>
    %c2 = arith.constant 2 : index
    %6 = memref.load %arg0[%c2] : memref<16xf32, #tpu.memory_space<smem>>
    %7 = vector.broadcast %6 : f32 to vector<16x128xf32>
    %cst_0 = arith.constant 3.000000e+00 : f32
    %8 = vector.broadcast %cst_0 : f32 to vector<16x128xf32>
    %9 = arith.mulf %8, %7 : vector<16x128xf32>
    %c3 = arith.constant 3 : index
    %10 = memref.load %arg0[%c3] : memref<16xf32, #tpu.memory_space<smem>>
    %11 = vector.broadcast %10 : f32 to vector<16x128xf32>
    %c4 = arith.constant 4 : index
    %12 = memref.load %arg0[%c4] : memref<16xf32, #tpu.memory_space<smem>>
    %13 = vector.broadcast %12 : f32 to vector<16x128xf32>
    %cst_1 = arith.constant 3.000000e+00 : f32
    %14 = vector.broadcast %cst_1 : f32 to vector<16x128xf32>
    %15 = arith.mulf %14, %13 : vector<16x128xf32>
    %c5 = arith.constant 5 : index
    %16 = memref.load %arg0[%c5] : memref<16xf32, #tpu.memory_space<smem>>
    %17 = vector.broadcast %16 : f32 to vector<16x128xf32>
    %cst_2 = arith.constant 9.000000e+00 : f32
    %18 = vector.broadcast %cst_2 : f32 to vector<16x128xf32>
    %19 = arith.mulf %18, %17 : vector<16x128xf32>
    %c6 = arith.constant 6 : index
    %20 = memref.load %arg0[%c6] : memref<16xf32, #tpu.memory_space<smem>>
    %21 = vector.broadcast %20 : f32 to vector<16x128xf32>
    %cst_3 = arith.constant 9.000000e+00 : f32
    %22 = vector.broadcast %cst_3 : f32 to vector<16x128xf32>
    %23 = arith.mulf %22, %21 : vector<16x128xf32>
    %c7 = arith.constant 7 : index
    %24 = memref.load %arg0[%c7] : memref<16xf32, #tpu.memory_space<smem>>
    %25 = vector.broadcast %24 : f32 to vector<16x128xf32>
    %cst_4 = arith.constant 3.000000e+00 : f32
    %26 = vector.broadcast %cst_4 : f32 to vector<16x128xf32>
    %27 = arith.mulf %26, %25 : vector<16x128xf32>
    %c8 = arith.constant 8 : index
    %28 = memref.load %arg0[%c8] : memref<16xf32, #tpu.memory_space<smem>>
    %29 = vector.broadcast %28 : f32 to vector<16x128xf32>
    %cst_5 = arith.constant 3.000000e+00 : f32
    %30 = vector.broadcast %cst_5 : f32 to vector<16x128xf32>
    %31 = arith.mulf %30, %29 : vector<16x128xf32>
    %c9 = arith.constant 9 : index
    %32 = memref.load %arg0[%c9] : memref<16xf32, #tpu.memory_space<smem>>
    %33 = vector.broadcast %32 : f32 to vector<16x128xf32>
    %cst_6 = arith.constant 9.000000e+00 : f32
    %34 = vector.broadcast %cst_6 : f32 to vector<16x128xf32>
    %35 = arith.mulf %34, %33 : vector<16x128xf32>
    %c10 = arith.constant 10 : index
    %36 = memref.load %arg0[%c10] : memref<16xf32, #tpu.memory_space<smem>>
    %37 = vector.broadcast %36 : f32 to vector<16x128xf32>
    %cst_7 = arith.constant 9.000000e+00 : f32
    %38 = vector.broadcast %cst_7 : f32 to vector<16x128xf32>
    %39 = arith.mulf %38, %37 : vector<16x128xf32>
    %c11 = arith.constant 11 : index
    %40 = memref.load %arg0[%c11] : memref<16xf32, #tpu.memory_space<smem>>
    %41 = vector.broadcast %40 : f32 to vector<16x128xf32>
    %cst_8 = arith.constant 3.000000e+00 : f32
    %42 = vector.broadcast %cst_8 : f32 to vector<16x128xf32>
    %43 = arith.mulf %42, %41 : vector<16x128xf32>
    %c12 = arith.constant 12 : index
    %44 = memref.load %arg0[%c12] : memref<16xf32, #tpu.memory_space<smem>>
    %45 = vector.broadcast %44 : f32 to vector<16x128xf32>
    %c13 = arith.constant 13 : index
    %46 = memref.load %arg0[%c13] : memref<16xf32, #tpu.memory_space<smem>>
    %47 = vector.broadcast %46 : f32 to vector<16x128xf32>
    %cst_9 = arith.constant 3.000000e+00 : f32
    %48 = vector.broadcast %cst_9 : f32 to vector<16x128xf32>
    %49 = arith.mulf %48, %47 : vector<16x128xf32>
    %c14 = arith.constant 14 : index
    %50 = memref.load %arg0[%c14] : memref<16xf32, #tpu.memory_space<smem>>
    %51 = vector.broadcast %50 : f32 to vector<16x128xf32>
    %cst_10 = arith.constant 3.000000e+00 : f32
    %52 = vector.broadcast %cst_10 : f32 to vector<16x128xf32>
    %53 = arith.mulf %52, %51 : vector<16x128xf32>
    %c15 = arith.constant 15 : index
    %54 = memref.load %arg0[%c15] : memref<16xf32, #tpu.memory_space<smem>>
    %55 = vector.broadcast %54 : f32 to vector<16x128xf32>
    %56 = tpu.iota {dimensions = array<i32: 0>} : vector<16x128xi32>
    %57 = tpu.iota {dimensions = array<i32: 1>} : vector<16x128xi32>
    %c0_i32 = arith.constant 0 : i32
    %58 = vector.broadcast %c0_i32 : i32 to vector<16x128xi32>
    %59 = arith.cmpi eq, %56, %58 : vector<16x128xi32>
    %c0_i32_11 = arith.constant 0 : i32
    %60 = vector.broadcast %c0_i32_11 : i32 to vector<16x128xi32>
    %61 = arith.cmpi eq, %57, %60 : vector<16x128xi32>
    %62 = arith.andi %59, %61 : vector<16x128xi1>
    %cst_12 = arith.constant 1.000000e+00 : f32
    %cst_13 = arith.constant 0.000000e+00 : f32
    %63 = vector.broadcast %cst_12 : f32 to vector<16x128xf32>
    %64 = vector.broadcast %cst_13 : f32 to vector<16x128xf32>
    %65 = arith.select %62, %63, %64 : vector<16x128xi1>, vector<16x128xf32>
    %66 = arith.mulf %1, %65 : vector<16x128xf32>
    %c1_i32 = arith.constant 1 : i32
    %67 = tpu.dynamic_rotate %65 by %c1_i32 dim 1 : vector<16x128xf32>, i32 -> vector<16x128xf32>
    %68 = arith.mulf %5, %67 : vector<16x128xf32>
    %69 = arith.addf %66, %68 : vector<16x128xf32>
    %c2_i32 = arith.constant 2 : i32
    %70 = tpu.dynamic_rotate %65 by %c2_i32 dim 1 : vector<16x128xf32>, i32 -> vector<16x128xf32>
    %71 = arith.mulf %9, %70 : vector<16x128xf32>
    %72 = arith.addf %69, %71 : vector<16x128xf32>
    %c3_i32 = arith.constant 3 : i32
    %73 = tpu.dynamic_rotate %65 by %c3_i32 dim 1 : vector<16x128xf32>, i32 -> vector<16x128xf32>
    %74 = arith.mulf %11, %73 : vector<16x128xf32>
    %75 = arith.addf %72, %74 : vector<16x128xf32>
    %c1_i32_14 = arith.constant 1 : i32
    %76 = tpu.dynamic_rotate %65 by %c1_i32_14 dim 0 : vector<16x128xf32>, i32 -> vector<16x128xf32>
    %77 = arith.mulf %15, %76 : vector<16x128xf32>
    %c1_i32_15 = arith.constant 1 : i32
    %78 = tpu.dynamic_rotate %76 by %c1_i32_15 dim 1 : vector<16x128xf32>, i32 -> vector<16x128xf32>
    %79 = arith.mulf %19, %78 : vector<16x128xf32>
    %80 = arith.addf %77, %79 : vector<16x128xf32>
    %c2_i32_16 = arith.constant 2 : i32
    %81 = tpu.dynamic_rotate %76 by %c2_i32_16 dim 1 : vector<16x128xf32>, i32 -> vector<16x128xf32>
    %82 = arith.mulf %23, %81 : vector<16x128xf32>
    %83 = arith.addf %80, %82 : vector<16x128xf32>
    %c3_i32_17 = arith.constant 3 : i32
    %84 = tpu.dynamic_rotate %76 by %c3_i32_17 dim 1 : vector<16x128xf32>, i32 -> vector<16x128xf32>
    %85 = arith.mulf %27, %84 : vector<16x128xf32>
    %86 = arith.addf %83, %85 : vector<16x128xf32>
    %c2_i32_18 = arith.constant 2 : i32
    %87 = tpu.dynamic_rotate %65 by %c2_i32_18 dim 0 : vector<16x128xf32>, i32 -> vector<16x128xf32>
    %88 = arith.mulf %31, %87 : vector<16x128xf32>
    %c1_i32_19 = arith.constant 1 : i32
    %89 = tpu.dynamic_rotate %87 by %c1_i32_19 dim 1 : vector<16x128xf32>, i32 -> vector<16x128xf32>
    %90 = arith.mulf %35, %89 : vector<16x128xf32>
    %91 = arith.addf %88, %90 : vector<16x128xf32>
    %c2_i32_20 = arith.constant 2 : i32
    %92 = tpu.dynamic_rotate %87 by %c2_i32_20 dim 1 : vector<16x128xf32>, i32 -> vector<16x128xf32>
    %93 = arith.mulf %39, %92 : vector<16x128xf32>
    %94 = arith.addf %91, %93 : vector<16x128xf32>
    %c3_i32_21 = arith.constant 3 : i32
    %95 = tpu.dynamic_rotate %87 by %c3_i32_21 dim 1 : vector<16x128xf32>, i32 -> vector<16x128xf32>
    %96 = arith.mulf %43, %95 : vector<16x128xf32>
    %97 = arith.addf %94, %96 : vector<16x128xf32>
    %c3_i32_22 = arith.constant 3 : i32
    %98 = tpu.dynamic_rotate %65 by %c3_i32_22 dim 0 : vector<16x128xf32>, i32 -> vector<16x128xf32>
    %99 = arith.mulf %45, %98 : vector<16x128xf32>
    %c1_i32_23 = arith.constant 1 : i32
    %100 = tpu.dynamic_rotate %98 by %c1_i32_23 dim 1 : vector<16x128xf32>, i32 -> vector<16x128xf32>
    %101 = arith.mulf %49, %100 : vector<16x128xf32>
    %102 = arith.addf %99, %101 : vector<16x128xf32>
    %c2_i32_24 = arith.constant 2 : i32
    %103 = tpu.dynamic_rotate %98 by %c2_i32_24 dim 1 : vector<16x128xf32>, i32 -> vector<16x128xf32>
    %104 = arith.mulf %53, %103 : vector<16x128xf32>
    %105 = arith.addf %102, %104 : vector<16x128xf32>
    %c3_i32_25 = arith.constant 3 : i32
    %106 = tpu.dynamic_rotate %98 by %c3_i32_25 dim 1 : vector<16x128xf32>, i32 -> vector<16x128xf32>
    %107 = arith.mulf %55, %106 : vector<16x128xf32>
    %108 = arith.addf %105, %107 : vector<16x128xf32>
    %109 = arith.addf %75, %86 : vector<16x128xf32>
    %110 = arith.addf %97, %108 : vector<16x128xf32>
    %111 = arith.addf %109, %110 : vector<16x128xf32>
    %cst_26 = arith.constant 5.000000e-01 : f32
    %112 = vector.broadcast %cst_26 : f32 to vector<16x128xf32>
    %113 = arith.mulf %112, %111 : vector<16x128xf32>
    %114 = arith.mulf %1, %111 : vector<16x128xf32>
    %c1_i32_27 = arith.constant 1 : i32
    %115 = tpu.dynamic_rotate %111 by %c1_i32_27 dim 1 : vector<16x128xf32>, i32 -> vector<16x128xf32>
    %116 = arith.mulf %5, %115 : vector<16x128xf32>
    %117 = arith.addf %114, %116 : vector<16x128xf32>
    %c2_i32_28 = arith.constant 2 : i32
    %118 = tpu.dynamic_rotate %111 by %c2_i32_28 dim 1 : vector<16x128xf32>, i32 -> vector<16x128xf32>
    %119 = arith.mulf %9, %118 : vector<16x128xf32>
    %120 = arith.addf %117, %119 : vector<16x128xf32>
    %c3_i32_29 = arith.constant 3 : i32
    %121 = tpu.dynamic_rotate %111 by %c3_i32_29 dim 1 : vector<16x128xf32>, i32 -> vector<16x128xf32>
    %122 = arith.mulf %11, %121 : vector<16x128xf32>
    %123 = arith.addf %120, %122 : vector<16x128xf32>
    %c1_i32_30 = arith.constant 1 : i32
    %124 = tpu.dynamic_rotate %111 by %c1_i32_30 dim 0 : vector<16x128xf32>, i32 -> vector<16x128xf32>
    %125 = arith.mulf %15, %124 : vector<16x128xf32>
    %c1_i32_31 = arith.constant 1 : i32
    %126 = tpu.dynamic_rotate %124 by %c1_i32_31 dim 1 : vector<16x128xf32>, i32 -> vector<16x128xf32>
    %127 = arith.mulf %19, %126 : vector<16x128xf32>
    %128 = arith.addf %125, %127 : vector<16x128xf32>
    %c2_i32_32 = arith.constant 2 : i32
    %129 = tpu.dynamic_rotate %124 by %c2_i32_32 dim 1 : vector<16x128xf32>, i32 -> vector<16x128xf32>
    %130 = arith.mulf %23, %129 : vector<16x128xf32>
    %131 = arith.addf %128, %130 : vector<16x128xf32>
    %c3_i32_33 = arith.constant 3 : i32
    %132 = tpu.dynamic_rotate %124 by %c3_i32_33 dim 1 : vector<16x128xf32>, i32 -> vector<16x128xf32>
    %133 = arith.mulf %27, %132 : vector<16x128xf32>
    %134 = arith.addf %131, %133 : vector<16x128xf32>
    %c2_i32_34 = arith.constant 2 : i32
    %135 = tpu.dynamic_rotate %111 by %c2_i32_34 dim 0 : vector<16x128xf32>, i32 -> vector<16x128xf32>
    %136 = arith.mulf %31, %135 : vector<16x128xf32>
    %c1_i32_35 = arith.constant 1 : i32
    %137 = tpu.dynamic_rotate %135 by %c1_i32_35 dim 1 : vector<16x128xf32>, i32 -> vector<16x128xf32>
    %138 = arith.mulf %35, %137 : vector<16x128xf32>
    %139 = arith.addf %136, %138 : vector<16x128xf32>
    %c2_i32_36 = arith.constant 2 : i32
    %140 = tpu.dynamic_rotate %135 by %c2_i32_36 dim 1 : vector<16x128xf32>, i32 -> vector<16x128xf32>
    %141 = arith.mulf %39, %140 : vector<16x128xf32>
    %142 = arith.addf %139, %141 : vector<16x128xf32>
    %c3_i32_37 = arith.constant 3 : i32
    %143 = tpu.dynamic_rotate %135 by %c3_i32_37 dim 1 : vector<16x128xf32>, i32 -> vector<16x128xf32>
    %144 = arith.mulf %43, %143 : vector<16x128xf32>
    %145 = arith.addf %142, %144 : vector<16x128xf32>
    %c3_i32_38 = arith.constant 3 : i32
    %146 = tpu.dynamic_rotate %111 by %c3_i32_38 dim 0 : vector<16x128xf32>, i32 -> vector<16x128xf32>
    %147 = arith.mulf %45, %146 : vector<16x128xf32>
    %c1_i32_39 = arith.constant 1 : i32
    %148 = tpu.dynamic_rotate %146 by %c1_i32_39 dim 1 : vector<16x128xf32>, i32 -> vector<16x128xf32>
    %149 = arith.mulf %49, %148 : vector<16x128xf32>
    %150 = arith.addf %147, %149 : vector<16x128xf32>
    %c2_i32_40 = arith.constant 2 : i32
    %151 = tpu.dynamic_rotate %146 by %c2_i32_40 dim 1 : vector<16x128xf32>, i32 -> vector<16x128xf32>
    %152 = arith.mulf %53, %151 : vector<16x128xf32>
    %153 = arith.addf %150, %152 : vector<16x128xf32>
    %c3_i32_41 = arith.constant 3 : i32
    %154 = tpu.dynamic_rotate %146 by %c3_i32_41 dim 1 : vector<16x128xf32>, i32 -> vector<16x128xf32>
    %155 = arith.mulf %55, %154 : vector<16x128xf32>
    %156 = arith.addf %153, %155 : vector<16x128xf32>
    %157 = arith.addf %123, %134 : vector<16x128xf32>
    %158 = arith.addf %145, %156 : vector<16x128xf32>
    %159 = arith.addf %157, %158 : vector<16x128xf32>
    %cst_42 = arith.constant 2.500000e-01 : f32
    %160 = vector.broadcast %cst_42 : f32 to vector<16x128xf32>
    %161 = arith.mulf %160, %159 : vector<16x128xf32>
    %c1_i32_43 = arith.constant 1 : i32
    %162 = tpu.dynamic_rotate %113 by %c1_i32_43 dim 1 : vector<16x128xf32>, i32 -> vector<16x128xf32>
    %cst_44 = arith.constant 3.000000e+00 : f32
    %163 = vector.broadcast %cst_44 : f32 to vector<16x128xf32>
    %164 = arith.mulf %163, %162 : vector<16x128xf32>
    %165 = arith.addf %113, %164 : vector<16x128xf32>
    %c2_i32_45 = arith.constant 2 : i32
    %166 = tpu.dynamic_rotate %113 by %c2_i32_45 dim 1 : vector<16x128xf32>, i32 -> vector<16x128xf32>
    %cst_46 = arith.constant 3.000000e+00 : f32
    %167 = vector.broadcast %cst_46 : f32 to vector<16x128xf32>
    %168 = arith.mulf %167, %166 : vector<16x128xf32>
    %169 = arith.addf %165, %168 : vector<16x128xf32>
    %c3_i32_47 = arith.constant 3 : i32
    %170 = tpu.dynamic_rotate %113 by %c3_i32_47 dim 1 : vector<16x128xf32>, i32 -> vector<16x128xf32>
    %171 = arith.addf %169, %170 : vector<16x128xf32>
    %c1_i32_48 = arith.constant 1 : i32
    %172 = tpu.dynamic_rotate %113 by %c1_i32_48 dim 0 : vector<16x128xf32>, i32 -> vector<16x128xf32>
    %cst_49 = arith.constant 3.000000e+00 : f32
    %173 = vector.broadcast %cst_49 : f32 to vector<16x128xf32>
    %174 = arith.mulf %173, %172 : vector<16x128xf32>
    %c1_i32_50 = arith.constant 1 : i32
    %175 = tpu.dynamic_rotate %172 by %c1_i32_50 dim 1 : vector<16x128xf32>, i32 -> vector<16x128xf32>
    %cst_51 = arith.constant 9.000000e+00 : f32
    %176 = vector.broadcast %cst_51 : f32 to vector<16x128xf32>
    %177 = arith.mulf %176, %175 : vector<16x128xf32>
    %178 = arith.addf %174, %177 : vector<16x128xf32>
    %c2_i32_52 = arith.constant 2 : i32
    %179 = tpu.dynamic_rotate %172 by %c2_i32_52 dim 1 : vector<16x128xf32>, i32 -> vector<16x128xf32>
    %cst_53 = arith.constant 9.000000e+00 : f32
    %180 = vector.broadcast %cst_53 : f32 to vector<16x128xf32>
    %181 = arith.mulf %180, %179 : vector<16x128xf32>
    %182 = arith.addf %178, %181 : vector<16x128xf32>
    %c3_i32_54 = arith.constant 3 : i32
    %183 = tpu.dynamic_rotate %172 by %c3_i32_54 dim 1 : vector<16x128xf32>, i32 -> vector<16x128xf32>
    %cst_55 = arith.constant 3.000000e+00 : f32
    %184 = vector.broadcast %cst_55 : f32 to vector<16x128xf32>
    %185 = arith.mulf %184, %183 : vector<16x128xf32>
    %186 = arith.addf %182, %185 : vector<16x128xf32>
    %c2_i32_56 = arith.constant 2 : i32
    %187 = tpu.dynamic_rotate %113 by %c2_i32_56 dim 0 : vector<16x128xf32>, i32 -> vector<16x128xf32>
    %cst_57 = arith.constant 3.000000e+00 : f32
    %188 = vector.broadcast %cst_57 : f32 to vector<16x128xf32>
    %189 = arith.mulf %188, %187 : vector<16x128xf32>
    %c1_i32_58 = arith.constant 1 : i32
    %190 = tpu.dynamic_rotate %187 by %c1_i32_58 dim 1 : vector<16x128xf32>, i32 -> vector<16x128xf32>
    %cst_59 = arith.constant 9.000000e+00 : f32
    %191 = vector.broadcast %cst_59 : f32 to vector<16x128xf32>
    %192 = arith.mulf %191, %190 : vector<16x128xf32>
    %193 = arith.addf %189, %192 : vector<16x128xf32>
    %c2_i32_60 = arith.constant 2 : i32
    %194 = tpu.dynamic_rotate %187 by %c2_i32_60 dim 1 : vector<16x128xf32>, i32 -> vector<16x128xf32>
    %cst_61 = arith.constant 9.000000e+00 : f32
    %195 = vector.broadcast %cst_61 : f32 to vector<16x128xf32>
    %196 = arith.mulf %195, %194 : vector<16x128xf32>
    %197 = arith.addf %193, %196 : vector<16x128xf32>
    %c3_i32_62 = arith.constant 3 : i32
    %198 = tpu.dynamic_rotate %187 by %c3_i32_62 dim 1 : vector<16x128xf32>, i32 -> vector<16x128xf32>
    %cst_63 = arith.constant 3.000000e+00 : f32
    %199 = vector.broadcast %cst_63 : f32 to vector<16x128xf32>
    %200 = arith.mulf %199, %198 : vector<16x128xf32>
    %201 = arith.addf %197, %200 : vector<16x128xf32>
    %c3_i32_64 = arith.constant 3 : i32
    %202 = tpu.dynamic_rotate %113 by %c3_i32_64 dim 0 : vector<16x128xf32>, i32 -> vector<16x128xf32>
    %c1_i32_65 = arith.constant 1 : i32
    %203 = tpu.dynamic_rotate %202 by %c1_i32_65 dim 1 : vector<16x128xf32>, i32 -> vector<16x128xf32>
    %cst_66 = arith.constant 3.000000e+00 : f32
    %204 = vector.broadcast %cst_66 : f32 to vector<16x128xf32>
    %205 = arith.mulf %204, %203 : vector<16x128xf32>
    %206 = arith.addf %202, %205 : vector<16x128xf32>
    %c2_i32_67 = arith.constant 2 : i32
    %207 = tpu.dynamic_rotate %202 by %c2_i32_67 dim 1 : vector<16x128xf32>, i32 -> vector<16x128xf32>
    %cst_68 = arith.constant 3.000000e+00 : f32
    %208 = vector.broadcast %cst_68 : f32 to vector<16x128xf32>
    %209 = arith.mulf %208, %207 : vector<16x128xf32>
    %210 = arith.addf %206, %209 : vector<16x128xf32>
    %c3_i32_69 = arith.constant 3 : i32
    %211 = tpu.dynamic_rotate %202 by %c3_i32_69 dim 1 : vector<16x128xf32>, i32 -> vector<16x128xf32>
    %212 = arith.addf %210, %211 : vector<16x128xf32>
    %213 = arith.addf %171, %186 : vector<16x128xf32>
    %214 = arith.addf %201, %212 : vector<16x128xf32>
    %215 = arith.addf %213, %214 : vector<16x128xf32>
    %216 = arith.addf %215, %161 : vector<16x128xf32>
    %217 = arith.mulf %1, %159 : vector<16x128xf32>
    %c1_i32_70 = arith.constant 1 : i32
    %218 = tpu.dynamic_rotate %159 by %c1_i32_70 dim 1 : vector<16x128xf32>, i32 -> vector<16x128xf32>
    %219 = arith.mulf %5, %218 : vector<16x128xf32>
    %220 = arith.addf %217, %219 : vector<16x128xf32>
    %c2_i32_71 = arith.constant 2 : i32
    %221 = tpu.dynamic_rotate %159 by %c2_i32_71 dim 1 : vector<16x128xf32>, i32 -> vector<16x128xf32>
    %222 = arith.mulf %9, %221 : vector<16x128xf32>
    %223 = arith.addf %220, %222 : vector<16x128xf32>
    %c3_i32_72 = arith.constant 3 : i32
    %224 = tpu.dynamic_rotate %159 by %c3_i32_72 dim 1 : vector<16x128xf32>, i32 -> vector<16x128xf32>
    %225 = arith.mulf %11, %224 : vector<16x128xf32>
    %226 = arith.addf %223, %225 : vector<16x128xf32>
    %c1_i32_73 = arith.constant 1 : i32
    %227 = tpu.dynamic_rotate %159 by %c1_i32_73 dim 0 : vector<16x128xf32>, i32 -> vector<16x128xf32>
    %228 = arith.mulf %15, %227 : vector<16x128xf32>
    %c1_i32_74 = arith.constant 1 : i32
    %229 = tpu.dynamic_rotate %227 by %c1_i32_74 dim 1 : vector<16x128xf32>, i32 -> vector<16x128xf32>
    %230 = arith.mulf %19, %229 : vector<16x128xf32>
    %231 = arith.addf %228, %230 : vector<16x128xf32>
    %c2_i32_75 = arith.constant 2 : i32
    %232 = tpu.dynamic_rotate %227 by %c2_i32_75 dim 1 : vector<16x128xf32>, i32 -> vector<16x128xf32>
    %233 = arith.mulf %23, %232 : vector<16x128xf32>
    %234 = arith.addf %231, %233 : vector<16x128xf32>
    %c3_i32_76 = arith.constant 3 : i32
    %235 = tpu.dynamic_rotate %227 by %c3_i32_76 dim 1 : vector<16x128xf32>, i32 -> vector<16x128xf32>
    %236 = arith.mulf %27, %235 : vector<16x128xf32>
    %237 = arith.addf %234, %236 : vector<16x128xf32>
    %c2_i32_77 = arith.constant 2 : i32
    %238 = tpu.dynamic_rotate %159 by %c2_i32_77 dim 0 : vector<16x128xf32>, i32 -> vector<16x128xf32>
    %239 = arith.mulf %31, %238 : vector<16x128xf32>
    %c1_i32_78 = arith.constant 1 : i32
    %240 = tpu.dynamic_rotate %238 by %c1_i32_78 dim 1 : vector<16x128xf32>, i32 -> vector<16x128xf32>
    %241 = arith.mulf %35, %240 : vector<16x128xf32>
    %242 = arith.addf %239, %241 : vector<16x128xf32>
    %c2_i32_79 = arith.constant 2 : i32
    %243 = tpu.dynamic_rotate %238 by %c2_i32_79 dim 1 : vector<16x128xf32>, i32 -> vector<16x128xf32>
    %244 = arith.mulf %39, %243 : vector<16x128xf32>
    %245 = arith.addf %242, %244 : vector<16x128xf32>
    %c3_i32_80 = arith.constant 3 : i32
    %246 = tpu.dynamic_rotate %238 by %c3_i32_80 dim 1 : vector<16x128xf32>, i32 -> vector<16x128xf32>
    %247 = arith.mulf %43, %246 : vector<16x128xf32>
    %248 = arith.addf %245, %247 : vector<16x128xf32>
    %c3_i32_81 = arith.constant 3 : i32
    %249 = tpu.dynamic_rotate %159 by %c3_i32_81 dim 0 : vector<16x128xf32>, i32 -> vector<16x128xf32>
    %250 = arith.mulf %45, %249 : vector<16x128xf32>
    %c1_i32_82 = arith.constant 1 : i32
    %251 = tpu.dynamic_rotate %249 by %c1_i32_82 dim 1 : vector<16x128xf32>, i32 -> vector<16x128xf32>
    %252 = arith.mulf %49, %251 : vector<16x128xf32>
    %253 = arith.addf %250, %252 : vector<16x128xf32>
    %c2_i32_83 = arith.constant 2 : i32
    %254 = tpu.dynamic_rotate %249 by %c2_i32_83 dim 1 : vector<16x128xf32>, i32 -> vector<16x128xf32>
    %255 = arith.mulf %53, %254 : vector<16x128xf32>
    %256 = arith.addf %253, %255 : vector<16x128xf32>
    %c3_i32_84 = arith.constant 3 : i32
    %257 = tpu.dynamic_rotate %249 by %c3_i32_84 dim 1 : vector<16x128xf32>, i32 -> vector<16x128xf32>
    %258 = arith.mulf %55, %257 : vector<16x128xf32>
    %259 = arith.addf %256, %258 : vector<16x128xf32>
    %260 = arith.addf %226, %237 : vector<16x128xf32>
    %261 = arith.addf %248, %259 : vector<16x128xf32>
    %262 = arith.addf %260, %261 : vector<16x128xf32>
    %cst_85 = arith.constant 5.000000e-02 : f32
    %263 = vector.broadcast %cst_85 : f32 to vector<16x128xf32>
    %264 = arith.mulf %263, %262 : vector<16x128xf32>
    %c1_i32_86 = arith.constant 1 : i32
    %265 = tpu.dynamic_rotate %216 by %c1_i32_86 dim 1 : vector<16x128xf32>, i32 -> vector<16x128xf32>
    %cst_87 = arith.constant 3.000000e+00 : f32
    %266 = vector.broadcast %cst_87 : f32 to vector<16x128xf32>
    %267 = arith.mulf %266, %265 : vector<16x128xf32>
    %268 = arith.addf %216, %267 : vector<16x128xf32>
    %c2_i32_88 = arith.constant 2 : i32
    %269 = tpu.dynamic_rotate %216 by %c2_i32_88 dim 1 : vector<16x128xf32>, i32 -> vector<16x128xf32>
    %cst_89 = arith.constant 3.000000e+00 : f32
    %270 = vector.broadcast %cst_89 : f32 to vector<16x128xf32>
    %271 = arith.mulf %270, %269 : vector<16x128xf32>
    %272 = arith.addf %268, %271 : vector<16x128xf32>
    %c3_i32_90 = arith.constant 3 : i32
    %273 = tpu.dynamic_rotate %216 by %c3_i32_90 dim 1 : vector<16x128xf32>, i32 -> vector<16x128xf32>
    %274 = arith.addf %272, %273 : vector<16x128xf32>
    %c1_i32_91 = arith.constant 1 : i32
    %275 = tpu.dynamic_rotate %216 by %c1_i32_91 dim 0 : vector<16x128xf32>, i32 -> vector<16x128xf32>
    %cst_92 = arith.constant 3.000000e+00 : f32
    %276 = vector.broadcast %cst_92 : f32 to vector<16x128xf32>
    %277 = arith.mulf %276, %275 : vector<16x128xf32>
    %c1_i32_93 = arith.constant 1 : i32
    %278 = tpu.dynamic_rotate %275 by %c1_i32_93 dim 1 : vector<16x128xf32>, i32 -> vector<16x128xf32>
    %cst_94 = arith.constant 9.000000e+00 : f32
    %279 = vector.broadcast %cst_94 : f32 to vector<16x128xf32>
    %280 = arith.mulf %279, %278 : vector<16x128xf32>
    %281 = arith.addf %277, %280 : vector<16x128xf32>
    %c2_i32_95 = arith.constant 2 : i32
    %282 = tpu.dynamic_rotate %275 by %c2_i32_95 dim 1 : vector<16x128xf32>, i32 -> vector<16x128xf32>
    %cst_96 = arith.constant 9.000000e+00 : f32
    %283 = vector.broadcast %cst_96 : f32 to vector<16x128xf32>
    %284 = arith.mulf %283, %282 : vector<16x128xf32>
    %285 = arith.addf %281, %284 : vector<16x128xf32>
    %c3_i32_97 = arith.constant 3 : i32
    %286 = tpu.dynamic_rotate %275 by %c3_i32_97 dim 1 : vector<16x128xf32>, i32 -> vector<16x128xf32>
    %cst_98 = arith.constant 3.000000e+00 : f32
    %287 = vector.broadcast %cst_98 : f32 to vector<16x128xf32>
    %288 = arith.mulf %287, %286 : vector<16x128xf32>
    %289 = arith.addf %285, %288 : vector<16x128xf32>
    %c2_i32_99 = arith.constant 2 : i32
    %290 = tpu.dynamic_rotate %216 by %c2_i32_99 dim 0 : vector<16x128xf32>, i32 -> vector<16x128xf32>
    %cst_100 = arith.constant 3.000000e+00 : f32
    %291 = vector.broadcast %cst_100 : f32 to vector<16x128xf32>
    %292 = arith.mulf %291, %290 : vector<16x128xf32>
    %c1_i32_101 = arith.constant 1 : i32
    %293 = tpu.dynamic_rotate %290 by %c1_i32_101 dim 1 : vector<16x128xf32>, i32 -> vector<16x128xf32>
    %cst_102 = arith.constant 9.000000e+00 : f32
    %294 = vector.broadcast %cst_102 : f32 to vector<16x128xf32>
    %295 = arith.mulf %294, %293 : vector<16x128xf32>
    %296 = arith.addf %292, %295 : vector<16x128xf32>
    %c2_i32_103 = arith.constant 2 : i32
    %297 = tpu.dynamic_rotate %290 by %c2_i32_103 dim 1 : vector<16x128xf32>, i32 -> vector<16x128xf32>
    %cst_104 = arith.constant 9.000000e+00 : f32
    %298 = vector.broadcast %cst_104 : f32 to vector<16x128xf32>
    %299 = arith.mulf %298, %297 : vector<16x128xf32>
    %300 = arith.addf %296, %299 : vector<16x128xf32>
    %c3_i32_105 = arith.constant 3 : i32
    %301 = tpu.dynamic_rotate %290 by %c3_i32_105 dim 1 : vector<16x128xf32>, i32 -> vector<16x128xf32>
    %cst_106 = arith.constant 3.000000e+00 : f32
    %302 = vector.broadcast %cst_106 : f32 to vector<16x128xf32>
    %303 = arith.mulf %302, %301 : vector<16x128xf32>
    %304 = arith.addf %300, %303 : vector<16x128xf32>
    %c3_i32_107 = arith.constant 3 : i32
    %305 = tpu.dynamic_rotate %216 by %c3_i32_107 dim 0 : vector<16x128xf32>, i32 -> vector<16x128xf32>
    %c1_i32_108 = arith.constant 1 : i32
    %306 = tpu.dynamic_rotate %305 by %c1_i32_108 dim 1 : vector<16x128xf32>, i32 -> vector<16x128xf32>
    %cst_109 = arith.constant 3.000000e+00 : f32
    %307 = vector.broadcast %cst_109 : f32 to vector<16x128xf32>
    %308 = arith.mulf %307, %306 : vector<16x128xf32>
    %309 = arith.addf %305, %308 : vector<16x128xf32>
    %c2_i32_110 = arith.constant 2 : i32
    %310 = tpu.dynamic_rotate %305 by %c2_i32_110 dim 1 : vector<16x128xf32>, i32 -> vector<16x128xf32>
    %cst_111 = arith.constant 3.000000e+00 : f32
    %311 = vector.broadcast %cst_111 : f32 to vector<16x128xf32>
    %312 = arith.mulf %311, %310 : vector<16x128xf32>
    %313 = arith.addf %309, %312 : vector<16x128xf32>
    %c3_i32_112 = arith.constant 3 : i32
    %314 = tpu.dynamic_rotate %305 by %c3_i32_112 dim 1 : vector<16x128xf32>, i32 -> vector<16x128xf32>
    %315 = arith.addf %313, %314 : vector<16x128xf32>
    %316 = arith.addf %274, %289 : vector<16x128xf32>
    %317 = arith.addf %304, %315 : vector<16x128xf32>
    %318 = arith.addf %316, %317 : vector<16x128xf32>
    %319 = arith.addf %318, %264 : vector<16x128xf32>
    %c0_113 = arith.constant 0 : index
    %c0_114 = arith.constant 0 : index
    %320 = vector.load %arg1[%c0_113, %c0_114] : memref<16x1xf32, #tpu.memory_space<vmem>>, vector<16x1xf32>
    %321 = vector.broadcast %320 : vector<16x1xf32> to vector<16x128xf32>
    %322 = arith.mulf %319, %321 : vector<16x128xf32>
    %c0_115 = arith.constant 0 : index
    %c0_116 = arith.constant 0 : index
    %323 = vector.load %arg2[%c0_115, %c0_116] : memref<1x128xf32, #tpu.memory_space<vmem>>, vector<1x128xf32>
    %324 = vector.broadcast %323 : vector<1x128xf32> to vector<16x128xf32>
    %325 = arith.mulf %322, %324 : vector<16x128xf32>
    %cst_117 = arith.constant 2.500000e-01 : f32
    %326 = vector.broadcast %cst_117 : f32 to vector<16x128xf32>
    %327 = arith.addf %325, %326 : vector<16x128xf32>
    %c0_118 = arith.constant 0 : index
    %c0_119 = arith.constant 0 : index
    %328 = vector.load %arg3[%c0_118, %c0_119] : memref<16x128xf32, #tpu.memory_space<vmem>>, vector<16x128xf32>
    tpu.vector_store %arg3[%c0_118, %c0_119], %327 {strides = array<i32>} : memref<16x128xf32, #tpu.memory_space<vmem>>, vector<16x128xf32>,
    return
  }
}

</mosaic_0001>

<llo_original>
// kernel: fused.1
$region0: #{fused.1}
  #allocation0 [shape = 'u32[]', space=smem, size = 0x4, offset = 0x4, fixed_abs, tag = 'smem constant byte address 0x4 - core index']
  #allocation1 [shape = 'u32[144,128]{1,0:T(1,128)}', space=vmem, size = 0x12000, scoped, tag = 'internal scratch']
  %s0 = inlined_call_operand.vmem [shape: f32[16], index: 0, kind: input, shape index: {}]
  %s1 = inlined_call_operand.hbm [shape: f32[16,1], index: 1, kind: input, shape index: {}]
  %s2 = inlined_call_operand.vmem [shape: f32[1,128], index: 2, kind: input, shape index: {}]
  %s3 = inlined_call_operand.hbm [shape: f32[16,128], index: 3, kind: output, shape index: {}]
  %s4 = sld [smem:[#allocation0]]
  $region30: #{fused.1} parent=0
    _
  %s6 = ssub.s32 1, %s4
  %s7 = scalar_select 0, %s6, %s4
  $region1: #{fused.1} parent=0
    #allocation2 [shape = 'u8[512]{0}', space=smem, size = 0x200, scoped, tag = 'input window, operand 0, single buffered']
    #allocation3 [shape = 's32[1]{0}', space=sflag, size = 0x4, scoped, tag = 'scoped memory for fused.1']
    #allocation4 [shape = 's32[1]{0}', space=sflag, size = 0x4, scoped, tag = 'scoped memory for fused.1']
    #allocation5 [shape = 's32[1]{0}', space=sflag, size = 0x4, scoped, tag = 'scoped memory for fused.1']
    #allocation6 [shape = 'u8[8192]{0}', space=vmem, size = 0x2000, scoped, tag = 'input window, operand 1, single buffered']
    #allocation7 [shape = 'u8[8192]{0}', space=vmem, size = 0x2000, scoped, tag = 'output window, operand 0, single buffered']
    %8 = vsyncpa [#allocation5], 0
    %9 = vsyncpa [#allocation3], 0
    %10 = vsyncpa [#allocation4], 0
    // Predicated region
    $region2: #{fused.1} parent=1 // pred_check
      _
    $region3: #{fused.1} parent=1 // pred_check_branch
      %12 = sbr.rel (0) target = $region5
    $region4: #{fused.1} parent=1 // pred_region
      %s14 = ssub.s32 16, 16
      %15 = vsyncadd [#allocation5], %s14
      %s17 = sshll.u32 %s0, 4
      %s18 = int_to_ptr.vmem [resolvable:$true] %s17
      %20 = dma.vmem_to_smem %s18, 16, [#allocation2], [#allocation5]
    $region5: #{fused.1} parent=1 // pred_fallthru
      _
    // Predicated region
    $region6: #{fused.1} parent=1 // pred_check
      _
    $region7: #{fused.1} parent=1 // pred_check_branch
      %22 = sbr.rel (0) target = $region9
    $region8: #{fused.1} parent=1 // pred_region
      %s24 = ssub.s32 256, 256
      %25 = vsyncadd [#allocation3], %s24
      %s26 = sshll.u32 [#allocation6], 4
      %s27 = int_to_ptr.vmem [resolvable:$true] %s26
      %32 = dma.hbm_to_vmem [thread:$0]  %s1, 256, %s27, [#allocation3], 128, 128, 8
    $region9: #{fused.1} parent=1 // pred_fallthru
      _
    // Predicated region
    $region10: #{fused.1} parent=1 // pred_check
      _
    $region11: #{fused.1} parent=1 // pred_check_branch
      %34 = sbr.rel (0) target = $region13
    $region12: #{fused.1} parent=1 // pred_region
      _
    $region13: #{fused.1} parent=1 // pred_fallthru
      _
    // Predicated region
    $region14: #{fused.1} parent=1 // pred_check
      _
    $region15: #{fused.1} parent=1 // pred_check_branch
      %36 = sbr.rel (0) target = $region17
    $region16: #{fused.1} parent=1 // pred_region
      %37 = dma.done [#allocation5], 16
    $region17: #{fused.1} parent=1 // pred_fallthru
      _
    // Predicated region
    $region18: #{fused.1} parent=1 // pred_check
      _
    $region19: #{fused.1} parent=1 // pred_check_branch
      %39 = sbr.rel (0) target = $region21
    $region20: #{fused.1} parent=1 // pred_region
      %40 = dma.done [#allocation3], 256
    $region21: #{fused.1} parent=1 // pred_fallthru
      _
    %41 = sfence
    %s42 = sld [smem:[#allocation2]]
    %v43 = vstv %s42
    %s44 = sld [smem:[#allocation2 + $0x1]]
    %v45 = vstv %s44
    %v46 = vmul.f32 %v45, 3.0
    %s47 = sld [smem:[#allocation2 + $0x2]]
    %v48 = vstv %s47
    %v49 = vmul.f32 %v48, 3.0
    %s50 = sld [smem:[#allocation2 + $0x3]]
    %v51 = vstv %s50
    %s52 = sld [smem:[#allocation2 + $0x4]]
    %v53 = vstv %s52
    %v54 = vmul.f32 %v53, 3.0
    %s55 = sld [smem:[#allocation2 + $0x5]]
    %v56 = vstv %s55
    %v57 = vmul.f32 %v56, 9.0
    %s58 = sld [smem:[#allocation2 + $0x6]]
    %v59 = vstv %s58
    %v60 = vmul.f32 %v59, 9.0
    %s61 = sld [smem:[#allocation2 + $0x7]]
    %v62 = vstv %s61
    %v63 = vmul.f32 %v62, 3.0
    %s64 = sld [smem:[#allocation2 + $0x8]]
    %v65 = vstv %s64
    %v66 = vmul.f32 %v65, 3.0
    %s67 = sld [smem:[#allocation2 + $0x9]]
    %v68 = vstv %s67
    %v69 = vmul.f32 %v68, 9.0
    %s70 = sld [smem:[#allocation2 + $0xa]]
    %v71 = vstv %s70
    %v72 = vmul.f32 %v71, 9.0
    %s73 = sld [smem:[#allocation2 + $0xb]]
    %v74 = vstv %s73
    %v75 = vmul.f32 %v74, 3.0
    %s76 = sld [smem:[#allocation2 + $0xc]]
    %v77 = vstv %s76
    %s78 = sld [smem:[#allocation2 + $0xd]]
    %v79 = vstv %s78
    %v80 = vmul.f32 %v79, 3.0
    %s81 = sld [smem:[#allocation2 + $0xe]]
    %v82 = vstv %s81
    %v83 = vmul.f32 %v82, 3.0
    %s84 = sld [smem:[#allocation2 + $0xf]]
    %v85 = vstv %s84
    %v86 = vlaneseq
    %v87 = vshrl.u32 %v86, 7
    %v88 = vadd.s32 %v87, 8
    %v89 = vlaneseq
    %v90 = vand.u32 %v89, 127
    %vm91 = vcmp.eq.s32.totalorder %v87, 0
    %vm92 = vcmp.eq.s32.totalorder %v88, 0
    %vm93 = vcmp.eq.s32.totalorder %v90, 0
    %vm94 = vmand %vm91, %vm93
    %vm95 = vmand %vm92, %vm93
    %v96 = vsel %vm94, 1.0, 0.0
    %v97 = vsel %vm95, 1.0, 0.0
    %v98 = vmul.f32 %v43, %v96
    %v99 = vmul.f32 %v43, %v97
    %100 = vrot.lane.b32.xlu0 %v96, 1
    %v101 = vpop.permute.xlu0 %100
    %102 = vrot.lane.b32.xlu0 %v97, 1
    %v103 = vpop.permute.xlu0 %102
    %v104 = vmul.f32 %v46, %v101
    %v105 = vmul.f32 %v46, %v103
    %v106 = vadd.f32 %v98, %v104
    %v107 = vadd.f32 %v99, %v105
    %108 = vrot.lane.b32.xlu0 %v96, 2
    %v109 = vpop.permute.xlu0 %108
    %110 = vrot.lane.b32.xlu0 %v97, 2
    %v111 = vpop.permute.xlu0 %110
    %v112 = vmul.f32 %v49, %v109
    %v113 = vmul.f32 %v49, %v111
    %v114 = vadd.f32 %v106, %v112
    %v115 = vadd.f32 %v107, %v113
    %116 = vrot.lane.b32.xlu0 %v96, 3
    %v117 = vpop.permute.xlu0 %116
    %118 = vrot.lane.b32.xlu0 %v97, 3
    %v119 = vpop.permute.xlu0 %118
    %v120 = vmul.f32 %v51, %v117
    %v121 = vmul.f32 %v51, %v119
    %v122 = vadd.f32 %v114, %v120
    %v123 = vadd.f32 %v115, %v121
    %v124 = vrot.slane %v96, 7
    %v125 = vrot.slane %v97, 7
    %vm126 = vcmp.lt.s32.totalorder %v87, 1
    %v127 = vsel %vm126, %v124, %v125
    %v128 = vsel %vm126, %v125, %v124
    %v129 = vmul.f32 %v54, %v128
    %v130 = vmul.f32 %v54, %v127
    %131 = vrot.lane.b32.xlu0 %v128, 1
    %v132 = vpop.permute.xlu0 %131
    %133 = vrot.lane.b32.xlu0 %v127, 1
    %v134 = vpop.permute.xlu0 %133
    %v135 = vmul.f32 %v57, %v132
    %v136 = vmul.f32 %v57, %v134
    %v137 = vadd.f32 %v129, %v135
    %v138 = vadd.f32 %v130, %v136
    %139 = vrot.lane.b32.xlu0 %v128, 2
    %v140 = vpop.permute.xlu0 %139
    %141 = vrot.lane.b32.xlu0 %v127, 2
    %v142 = vpop.permute.xlu0 %141
    %v143 = vmul.f32 %v60, %v140
    %v144 = vmul.f32 %v60, %v142
    %v145 = vadd.f32 %v137, %v143
    %v146 = vadd.f32 %v138, %v144
    %147 = vrot.lane.b32.xlu0 %v128, 3
    %v148 = vpop.permute.xlu0 %147
    %149 = vrot.lane.b32.xlu0 %v127, 3
    %v150 = vpop.permute.xlu0 %149
    %v151 = vmul.f32 %v63, %v148
    %v152 = vmul.f32 %v63, %v150
    %v153 = vadd.f32 %v145, %v151
    %v154 = vadd.f32 %v146, %v152
    %v155 = vrot.slane %v96, 6
    %v156 = vrot.slane %v97, 6
    %vm157 = vcmp.lt.s32.totalorder %v87, 2
    %v158 = vsel %vm157, %v155, %v156
    %v159 = vsel %vm157, %v156, %v155
    %v160 = vmul.f32 %v66, %v159
    %v161 = vmul.f32 %v66, %v158
    %162 = vrot.lane.b32.xlu0 %v159, 1
    %v163 = vpop.permute.xlu0 %162
    %164 = vrot.lane.b32.xlu0 %v158, 1
    %v165 = vpop.permute.xlu0 %164
    %v166 = vmul.f32 %v69, %v163
    %v167 = vmul.f32 %v69, %v165
    %v168 = vadd.f32 %v160, %v166
    %v169 = vadd.f32 %v161, %v167
    %170 = vrot.lane.b32.xlu0 %v159, 2
    %v171 = vpop.permute.xlu0 %170
    %172 = vrot.lane.b32.xlu0 %v158, 2
    %v173 = vpop.permute.xlu0 %172
    %v174 = vmul.f32 %v72, %v171
    %v175 = vmul.f32 %v72, %v173
    %v176 = vadd.f32 %v168, %v174
    %v177 = vadd.f32 %v169, %v175
    %178 = vrot.lane.b32.xlu0 %v159, 3
    %v179 = vpop.permute.xlu0 %178
    %180 = vrot.lane.b32.xlu0 %v158, 3
    %v181 = vpop.permute.xlu0 %180
    %v182 = vmul.f32 %v75, %v179
    %v183 = vmul.f32 %v75, %v181
    %v184 = vadd.f32 %v176, %v182
    %v185 = vadd.f32 %v177, %v183
    %v186 = vrot.slane %v96, 5
    %v187 = vrot.slane %v97, 5
    %vm188 = vcmp.lt.s32.totalorder %v87, 3
    %v189 = vsel %vm188, %v186, %v187
    %v190 = vsel %vm188, %v187, %v186
    %v191 = vmul.f32 %v77, %v190
    %v192 = vmul.f32 %v77, %v189
    %193 = vrot.lane.b32.xlu0 %v190, 1
    %v194 = vpop.permute.xlu0 %193
    %195 = vrot.lane.b32.xlu0 %v189, 1
    %v196 = vpop.permute.xlu0 %195
    %v197 = vmul.f32 %v80, %v194
    %v198 = vmul.f32 %v80, %v196
    %v199 = vadd.f32 %v191, %v197
    %v200 = vadd.f32 %v192, %v198
    %201 = vrot.lane.b32.xlu0 %v190, 2
    %v202 = vpop.permute.xlu0 %201
    %203 = vrot.lane.b32.xlu0 %v189, 2
    %v204 = vpop.permute.xlu0 %203
    %v205 = vmul.f32 %v83, %v202
    %v206 = vmul.f32 %v83, %v204
    %v207 = vadd.f32 %v199, %v205
    %v208 = vadd.f32 %v200, %v206
    %209 = vrot.lane.b32.xlu0 %v190, 3
    %v210 = vpop.permute.xlu0 %209
    %211 = vrot.lane.b32.xlu0 %v189, 3
    %v212 = vpop.permute.xlu0 %211
    %v213 = vmul.f32 %v85, %v210
    %v214 = vmul.f32 %v85, %v212
    %v215 = vadd.f32 %v207, %v213
    %v216 = vadd.f32 %v208, %v214
    %v217 = vadd.f32 %v122, %v153
    %v218 = vadd.f32 %v123, %v154
    %v219 = vadd.f32 %v184, %v215
    %v220 = vadd.f32 %v185, %v216
    %v221 = vadd.f32 %v217, %v219
    %v222 = vadd.f32 %v218, %v220
    %v223 = vmul.f32 %v221, 0.5
    %v224 = vmul.f32 %v222, 0.5
    %v225 = vmul.f32 %v43, %v221
    %v226 = vmul.f32 %v43, %v222
    %227 = vrot.lane.b32.xlu0 %v221, 1
    %v228 = vpop.permute.xlu0 %227
    %229 = vrot.lane.b32.xlu0 %v222, 1
    %v230 = vpop.permute.xlu0 %229
    %v231 = vmul.f32 %v46, %v228
    %v232 = vmul.f32 %v46, %v230
    %v233 = vadd.f32 %v225, %v231
    %v234 = vadd.f32 %v226, %v232
    %235 = vrot.lane.b32.xlu0 %v221, 2
    %v236 = vpop.permute.xlu0 %235
    %237 = vrot.lane.b32.xlu0 %v222, 2
    %v238 = vpop.permute.xlu0 %237
    %v239 = vmul.f32 %v49, %v236
    %v240 = vmul.f32 %v49, %v238
    %v241 = vadd.f32 %v233, %v239
    %v242 = vadd.f32 %v234, %v240
    %243 = vrot.lane.b32.xlu0 %v221, 3
    %v244 = vpop.permute.xlu0 %243
    %245 = vrot.lane.b32.xlu0 %v222, 3
    %v246 = vpop.permute.xlu0 %245
    %v247 = vmul.f32 %v51, %v244
    %v248 = vmul.f32 %v51, %v246
    %v249 = vadd.f32 %v241, %v247
    %v250 = vadd.f32 %v242, %v248
    %v251 = vrot.slane %v221, 7
    %v252 = vrot.slane %v222, 7
    %v253 = vsel %vm126, %v251, %v252
    %v254 = vsel %vm126, %v252, %v251
    %v255 = vmul.f32 %v54, %v254
    %v256 = vmul.f32 %v54, %v253
    %257 = vrot.lane.b32.xlu0 %v254, 1
    %v258 = vpop.permute.xlu0 %257
    %259 = vrot.lane.b32.xlu0 %v253, 1
    %v260 = vpop.permute.xlu0 %259
    %v261 = vmul.f32 %v57, %v258
    %v262 = vmul.f32 %v57, %v260
    %v263 = vadd.f32 %v255, %v261
    %v264 = vadd.f32 %v256, %v262
    %265 = vrot.lane.b32.xlu0 %v254, 2
    %v266 = vpop.permute.xlu0 %265
    %267 = vrot.lane.b32.xlu0 %v253, 2
    %v268 = vpop.permute.xlu0 %267
    %v269 = vmul.f32 %v60, %v266
    %v270 = vmul.f32 %v60, %v268
    %v271 = vadd.f32 %v263, %v269
    %v272 = vadd.f32 %v264, %v270
    %273 = vrot.lane.b32.xlu0 %v254, 3
    %v274 = vpop.permute.xlu0 %273
    %275 = vrot.lane.b32.xlu0 %v253, 3
    %v276 = vpop.permute.xlu0 %275
    %v277 = vmul.f32 %v63, %v274
    %v278 = vmul.f32 %v63, %v276
    %v279 = vadd.f32 %v271, %v277
    %v280 = vadd.f32 %v272, %v278
    %v281 = vrot.slane %v221, 6
    %v282 = vrot.slane %v222, 6
    %v283 = vsel %vm157, %v281, %v282
    %v284 = vsel %vm157, %v282, %v281
    %v285 = vmul.f32 %v66, %v284
    %v286 = vmul.f32 %v66, %v283
    %287 = vrot.lane.b32.xlu0 %v284, 1
    %v288 = vpop.permute.xlu0 %287
    %289 = vrot.lane.b32.xlu0 %v283, 1
    %v290 = vpop.permute.xlu0 %289
    %v291 = vmul.f32 %v69, %v288
    %v292 = vmul.f32 %v69, %v290
    %v293 = vadd.f32 %v285, %v291
    %v294 = vadd.f32 %v286, %v292
    %295 = vrot.lane.b32.xlu0 %v284, 2
    %v296 = vpop.permute.xlu0 %295
    %297 = vrot.lane.b32.xlu0 %v283, 2
    %v298 = vpop.permute.xlu0 %297
    %v299 = vmul.f32 %v72, %v296
    %v300 = vmul.f32 %v72, %v298
    %v301 = vadd.f32 %v293, %v299
    %v302 = vadd.f32 %v294, %v300
    %303 = vrot.lane.b32.xlu0 %v284, 3
    %v304 = vpop.permute.xlu0 %303
    %305 = vrot.lane.b32.xlu0 %v283, 3
    %v306 = vpop.permute.xlu0 %305
    %v307 = vmul.f32 %v75, %v304
    %v308 = vmul.f32 %v75, %v306
    %v309 = vadd.f32 %v301, %v307
    %v310 = vadd.f32 %v302, %v308
    %v311 = vrot.slane %v221, 5
    %v312 = vrot.slane %v222, 5
    %v313 = vsel %vm188, %v311, %v312
    %v314 = vsel %vm188, %v312, %v311
    %v315 = vmul.f32 %v77, %v314
    %v316 = vmul.f32 %v77, %v313
    %317 = vrot.lane.b32.xlu0 %v314, 1
    %v318 = vpop.permute.xlu0 %317
    %319 = vrot.lane.b32.xlu0 %v313, 1
    %v320 = vpop.permute.xlu0 %319
    %v321 = vmul.f32 %v80, %v318
    %v322 = vmul.f32 %v80, %v320
    %v323 = vadd.f32 %v315, %v321
    %v324 = vadd.f32 %v316, %v322
    %325 = vrot.lane.b32.xlu0 %v314, 2
    %v326 = vpop.permute.xlu0 %325
    %327 = vrot.lane.b32.xlu0 %v313, 2
    %v328 = vpop.permute.xlu0 %327
    %v329 = vmul.f32 %v83, %v326
    %v330 = vmul.f32 %v83, %v328
    %v331 = vadd.f32 %v323, %v329
    %v332 = vadd.f32 %v324, %v330
    %333 = vrot.lane.b32.xlu0 %v314, 3
    %v334 = vpop.permute.xlu0 %333
    %335 = vrot.lane.b32.xlu0 %v313, 3
    %v336 = vpop.permute.xlu0 %335
    %v337 = vmul.f32 %v85, %v334
    %v338 = vmul.f32 %v85, %v336
    %v339 = vadd.f32 %v331, %v337
    %v340 = vadd.f32 %v332, %v338
    %v341 = vadd.f32 %v249, %v279
    %v342 = vadd.f32 %v250, %v280
    %v343 = vadd.f32 %v309, %v339
    %v344 = vadd.f32 %v310, %v340
    %v345 = vadd.f32 %v341, %v343
    %v346 = vadd.f32 %v342, %v344
    %v347 = vmul.f32 %v345, 0.25
    %v348 = vmul.f32 %v346, 0.25
    %349 = vrot.lane.b32.xlu0 %v223, 1
    %v350 = vpop.permute.xlu0 %349
    %351 = vrot.lane.b32.xlu0 %v224, 1
    %v352 = vpop.permute.xlu0 %351
    %v353 = vmul.f32 %v350, 3.0
    %v354 = vmul.f32 %v352, 3.0
    %v355 = vadd.f32 %v223, %v353
    %v356 = vadd.f32 %v224, %v354
    %357 = vrot.lane.b32.xlu0 %v223, 2
    %v358 = vpop.permute.xlu0 %357
    %359 = vrot.lane.b32.xlu0 %v224, 2
    %v360 = vpop.permute.xlu0 %359
    %v361 = vmul.f32 %v358, 3.0
    %v362 = vmul.f32 %v360, 3.0
    %v363 = vadd.f32 %v355, %v361
    %v364 = vadd.f32 %v356, %v362
    %365 = vrot.lane.b32.xlu0 %v223, 3
    %v366 = vpop.permute.xlu0 %365
    %367 = vrot.lane.b32.xlu0 %v224, 3
    %v368 = vpop.permute.xlu0 %367
    %v369 = vadd.f32 %v363, %v366
    %v370 = vadd.f32 %v364, %v368
    %v371 = vrot.slane %v223, 7
    %v372 = vrot.slane %v224, 7
    %v373 = vsel %vm126, %v371, %v372
    %v374 = vsel %vm126, %v372, %v371
    %v375 = vmul.f32 %v374, 3.0
    %v376 = vmul.f32 %v373, 3.0
    %377 = vrot.lane.b32.xlu0 %v374, 1
    %v378 = vpop.permute.xlu0 %377
    %379 = vrot.lane.b32.xlu0 %v373, 1
    %v380 = vpop.permute.xlu0 %379
    %v381 = vmul.f32 %v378, 9.0
    %v382 = vmul.f32 %v380, 9.0
    %v383 = vadd.f32 %v375, %v381
    %v384 = vadd.f32 %v376, %v382
    %385 = vrot.lane.b32.xlu0 %v374, 2
    %v386 = vpop.permute.xlu0 %385
    %387 = vrot.lane.b32.xlu0 %v373, 2
    %v388 = vpop.permute.xlu0 %387
    %v389 = vmul.f32 %v386, 9.0
    %v390 = vmul.f32 %v388, 9.0
    %v391 = vadd.f32 %v383, %v389
    %v392 = vadd.f32 %v384, %v390
    %393 = vrot.lane.b32.xlu0 %v374, 3
    %v394 = vpop.permute.xlu0 %393
    %395 = vrot.lane.b32.xlu0 %v373, 3
    %v396 = vpop.permute.xlu0 %395
    %v397 = vmul.f32 %v394, 3.0
    %v398 = vmul.f32 %v396, 3.0
    %v399 = vadd.f32 %v391, %v397
    %v400 = vadd.f32 %v392, %v398
    %v401 = vrot.slane %v223, 6
    %v402 = vrot.slane %v224, 6
    %v403 = vsel %vm157, %v401, %v402
    %v404 = vsel %vm157, %v402, %v401
    %v405 = vmul.f32 %v404, 3.0
    %v406 = vmul.f32 %v403, 3.0
    %407 = vrot.lane.b32.xlu0 %v404, 1
    %v408 = vpop.permute.xlu0 %407
    %409 = vrot.lane.b32.xlu0 %v403, 1
    %v410 = vpop.permute.xlu0 %409
    %v411 = vmul.f32 %v408, 9.0
    %v412 = vmul.f32 %v410, 9.0
    %v413 = vadd.f32 %v405, %v411
    %v414 = vadd.f32 %v406, %v412
    %415 = vrot.lane.b32.xlu0 %v404, 2
    %v416 = vpop.permute.xlu0 %415
    %417 = vrot.lane.b32.xlu0 %v403, 2
    %v418 = vpop.permute.xlu0 %417
    %v419 = vmul.f32 %v416, 9.0
    %v420 = vmul.f32 %v418, 9.0
    %v421 = vadd.f32 %v413, %v419
    %v422 = vadd.f32 %v414, %v420
    %423 = vrot.lane.b32.xlu0 %v404, 3
    %v424 = vpop.permute.xlu0 %423
    %425 = vrot.lane.b32.xlu0 %v403, 3
    %v426 = vpop.permute.xlu0 %425
    %v427 = vmul.f32 %v424, 3.0
    %v428 = vmul.f32 %v426, 3.0
    %v429 = vadd.f32 %v421, %v427
    %v430 = vadd.f32 %v422, %v428
    %v431 = vrot.slane %v223, 5
    %v432 = vrot.slane %v224, 5
    %v433 = vsel %vm188, %v431, %v432
    %v434 = vsel %vm188, %v432, %v431
    %435 = vrot.lane.b32.xlu0 %v434, 1
    %v436 = vpop.permute.xlu0 %435
    %437 = vrot.lane.b32.xlu0 %v433, 1
    %v438 = vpop.permute.xlu0 %437
    %v439 = vmul.f32 %v436, 3.0
    %v440 = vmul.f32 %v438, 3.0
    %v441 = vadd.f32 %v434, %v439
    %v442 = vadd.f32 %v433, %v440
    %443 = vrot.lane.b32.xlu0 %v434, 2
    %v444 = vpop.permute.xlu0 %443
    %445 = vrot.lane.b32.xlu0 %v433, 2
    %v446 = vpop.permute.xlu0 %445
    %v447 = vmul.f32 %v444, 3.0
    %v448 = vmul.f32 %v446, 3.0
    %v449 = vadd.f32 %v441, %v447
    %v450 = vadd.f32 %v442, %v448
    %451 = vrot.lane.b32.xlu0 %v434, 3
    %v452 = vpop.permute.xlu0 %451
    %453 = vrot.lane.b32.xlu0 %v433, 3
    %v454 = vpop.permute.xlu0 %453
    %v455 = vadd.f32 %v449, %v452
    %v456 = vadd.f32 %v450, %v454
    %v457 = vadd.f32 %v369, %v399
    %v458 = vadd.f32 %v370, %v400
    %v459 = vadd.f32 %v429, %v455
    %v460 = vadd.f32 %v430, %v456
    %v461 = vadd.f32 %v457, %v459
    %v462 = vadd.f32 %v458, %v460
    %v463 = vadd.f32 %v461, %v347
    %v464 = vadd.f32 %v462, %v348
    %v465 = vmul.f32 %v43, %v345
    %v466 = vmul.f32 %v43, %v346
    %467 = vrot.lane.b32.xlu0 %v345, 1
    %v468 = vpop.permute.xlu0 %467
    %469 = vrot.lane.b32.xlu0 %v346, 1
    %v470 = vpop.permute.xlu0 %469
    %v471 = vmul.f32 %v46, %v468
    %v472 = vmul.f32 %v46, %v470
    %v473 = vadd.f32 %v465, %v471
    %v474 = vadd.f32 %v466, %v472
    %475 = vrot.lane.b32.xlu0 %v345, 2
    %v476 = vpop.permute.xlu0 %475
    %477 = vrot.lane.b32.xlu0 %v346, 2
    %v478 = vpop.permute.xlu0 %477
    %v479 = vmul.f32 %v49, %v476
    %v480 = vmul.f32 %v49, %v478
    %v481 = vadd.f32 %v473, %v479
    %v482 = vadd.f32 %v474, %v480
    %483 = vrot.lane.b32.xlu0 %v345, 3
    %v484 = vpop.permute.xlu0 %483
    %485 = vrot.lane.b32.xlu0 %v346, 3
    %v486 = vpop.permute.xlu0 %485
    %v487 = vmul.f32 %v51, %v484
    %v488 = vmul.f32 %v51, %v486
    %v489 = vadd.f32 %v481, %v487
    %v490 = vadd.f32 %v482, %v488
    %v491 = vrot.slane %v345, 7
    %v492 = vrot.slane %v346, 7
    %v493 = vsel %vm126, %v491, %v492
    %v494 = vsel %vm126, %v492, %v491
    %v495 = vmul.f32 %v54, %v494
    %v496 = vmul.f32 %v54, %v493
    %497 = vrot.lane.b32.xlu0 %v494, 1
    %v498 = vpop.permute.xlu0 %497
    %499 = vrot.lane.b32.xlu0 %v493, 1
    %v500 = vpop.permute.xlu0 %499
    %v501 = vmul.f32 %v57, %v498
    %v502 = vmul.f32 %v57, %v500
    %v503 = vadd.f32 %v495, %v501
    %v504 = vadd.f32 %v496, %v502
    %505 = vrot.lane.b32.xlu0 %v494, 2
    %v506 = vpop.permute.xlu0 %505
    %507 = vrot.lane.b32.xlu0 %v493, 2
    %v508 = vpop.permute.xlu0 %507
    %v509 = vmul.f32 %v60, %v506
    %v510 = vmul.f32 %v60, %v508
    %v511 = vadd.f32 %v503, %v509
    %v512 = vadd.f32 %v504, %v510
    %513 = vrot.lane.b32.xlu0 %v494, 3
    %v514 = vpop.permute.xlu0 %513
    %515 = vrot.lane.b32.xlu0 %v493, 3
    %v516 = vpop.permute.xlu0 %515
    %v517 = vmul.f32 %v63, %v514
    %v518 = vmul.f32 %v63, %v516
    %v519 = vadd.f32 %v511, %v517
    %v520 = vadd.f32 %v512, %v518
    %v521 = vrot.slane %v345, 6
    %v522 = vrot.slane %v346, 6
    %v523 = vsel %vm157, %v521, %v522
    %v524 = vsel %vm157, %v522, %v521
    %v525 = vmul.f32 %v66, %v524
    %v526 = vmul.f32 %v66, %v523
    %527 = vrot.lane.b32.xlu0 %v524, 1
    %v528 = vpop.permute.xlu0 %527
    %529 = vrot.lane.b32.xlu0 %v523, 1
    %v530 = vpop.permute.xlu0 %529
    %v531 = vmul.f32 %v69, %v528
    %v532 = vmul.f32 %v69, %v530
    %v533 = vadd.f32 %v525, %v531
    %v534 = vadd.f32 %v526, %v532
    %535 = vrot.lane.b32.xlu0 %v524, 2
    %v536 = vpop.permute.xlu0 %535
    %537 = vrot.lane.b32.xlu0 %v523, 2
    %v538 = vpop.permute.xlu0 %537
    %v539 = vmul.f32 %v72, %v536
    %v540 = vmul.f32 %v72, %v538
    %v541 = vadd.f32 %v533, %v539
    %v542 = vadd.f32 %v534, %v540
    %543 = vrot.lane.b32.xlu0 %v524, 3
    %v544 = vpop.permute.xlu0 %543
    %545 = vrot.lane.b32.xlu0 %v523, 3
    %v546 = vpop.permute.xlu0 %545
    %v547 = vmul.f32 %v75, %v544
    %v548 = vmul.f32 %v75, %v546
    %v549 = vadd.f32 %v541, %v547
    %v550 = vadd.f32 %v542, %v548
    %v551 = vrot.slane %v345, 5
    %v552 = vrot.slane %v346, 5
    %v553 = vsel %vm188, %v551, %v552
    %v554 = vsel %vm188, %v552, %v551
    %v555 = vmul.f32 %v77, %v554
    %v556 = vmul.f32 %v77, %v553
    %557 = vrot.lane.b32.xlu0 %v554, 1
    %v558 = vpop.permute.xlu0 %557
    %559 = vrot.lane.b32.xlu0 %v553, 1
    %v560 = vpop.permute.xlu0 %559
    %v561 = vmul.f32 %v80, %v558
    %v562 = vmul.f32 %v80, %v560
    %v563 = vadd.f32 %v555, %v561
    %v564 = vadd.f32 %v556, %v562
    %565 = vrot.lane.b32.xlu0 %v554, 2
    %v566 = vpop.permute.xlu0 %565
    %567 = vrot.lane.b32.xlu0 %v553, 2
    %v568 = vpop.permute.xlu0 %567
    %v569 = vmul.f32 %v83, %v566
    %v570 = vmul.f32 %v83, %v568
    %v571 = vadd.f32 %v563, %v569
    %v572 = vadd.f32 %v564, %v570
    %573 = vrot.lane.b32.xlu0 %v554, 3
    %v574 = vpop.permute.xlu0 %573
    %575 = vrot.lane.b32.xlu0 %v553, 3
    %v576 = vpop.permute.xlu0 %575
    %v577 = vmul.f32 %v85, %v574
    %v578 = vmul.f32 %v85, %v576
    %v579 = vadd.f32 %v571, %v577
    %v580 = vadd.f32 %v572, %v578
    %v581 = vadd.f32 %v489, %v519
    %v582 = vadd.f32 %v490, %v520
    %v583 = vadd.f32 %v549, %v579
    %v584 = vadd.f32 %v550, %v580
    %v585 = vadd.f32 %v581, %v583
    %v586 = vadd.f32 %v582, %v584
    %v587 = vmul.f32 %v585, 0.05
    %v588 = vmul.f32 %v586, 0.05
    %589 = vrot.lane.b32.xlu0 %v463, 1
    %v590 = vpop.permute.xlu0 %589
    %591 = vrot.lane.b32.xlu0 %v464, 1
    %v592 = vpop.permute.xlu0 %591
    %v593 = vmul.f32 %v590, 3.0
    %v594 = vmul.f32 %v592, 3.0
    %v595 = vadd.f32 %v463, %v593
    %v596 = vadd.f32 %v464, %v594
    %597 = vrot.lane.b32.xlu0 %v463, 2
    %v598 = vpop.permute.xlu0 %597
    %599 = vrot.lane.b32.xlu0 %v464, 2
    %v600 = vpop.permute.xlu0 %599
    %v601 = vmul.f32 %v598, 3.0
    %v602 = vmul.f32 %v600, 3.0
    %v603 = vadd.f32 %v595, %v601
    %v604 = vadd.f32 %v596, %v602
    %605 = vrot.lane.b32.xlu0 %v463, 3
    %v606 = vpop.permute.xlu0 %605
    %607 = vrot.lane.b32.xlu0 %v464, 3
    %v608 = vpop.permute.xlu0 %607
    %v609 = vadd.f32 %v603, %v606
    %v610 = vadd.f32 %v604, %v608
    %v611 = vrot.slane %v463, 7
    %v612 = vrot.slane %v464, 7
    %v613 = vsel %vm126, %v611, %v612
    %v614 = vsel %vm126, %v612, %v611
    %v615 = vmul.f32 %v614, 3.0
    %v616 = vmul.f32 %v613, 3.0
    %617 = vrot.lane.b32.xlu0 %v614, 1
    %v618 = vpop.permute.xlu0 %617
    %619 = vrot.lane.b32.xlu0 %v613, 1
    %v620 = vpop.permute.xlu0 %619
    %v621 = vmul.f32 %v618, 9.0
    %v622 = vmul.f32 %v620, 9.0
    %v623 = vadd.f32 %v615, %v621
    %v624 = vadd.f32 %v616, %v622
    %625 = vrot.lane.b32.xlu0 %v614, 2
    %v626 = vpop.permute.xlu0 %625
    %627 = vrot.lane.b32.xlu0 %v613, 2
    %v628 = vpop.permute.xlu0 %627
    %v629 = vmul.f32 %v626, 9.0
    %v630 = vmul.f32 %v628, 9.0
    %v631 = vadd.f32 %v623, %v629
    %v632 = vadd.f32 %v624, %v630
    %633 = vrot.lane.b32.xlu0 %v614, 3
    %v634 = vpop.permute.xlu0 %633
    %635 = vrot.lane.b32.xlu0 %v613, 3
    %v636 = vpop.permute.xlu0 %635
    %v637 = vmul.f32 %v634, 3.0
    %v638 = vmul.f32 %v636, 3.0
    %v639 = vadd.f32 %v631, %v637
    %v640 = vadd.f32 %v632, %v638
    %v641 = vrot.slane %v463, 6
    %v642 = vrot.slane %v464, 6
    %v643 = vsel %vm157, %v641, %v642
    %v644 = vsel %vm157, %v642, %v641
    %v645 = vmul.f32 %v644, 3.0
    %v646 = vmul.f32 %v643, 3.0
    %647 = vrot.lane.b32.xlu0 %v644, 1
    %v648 = vpop.permute.xlu0 %647
    %649 = vrot.lane.b32.xlu0 %v643, 1
    %v650 = vpop.permute.xlu0 %649
    %v651 = vmul.f32 %v648, 9.0
    %v652 = vmul.f32 %v650, 9.0
    %v653 = vadd.f32 %v645, %v651
    %v654 = vadd.f32 %v646, %v652
    %655 = vrot.lane.b32.xlu0 %v644, 2
    %v656 = vpop.permute.xlu0 %655
    %657 = vrot.lane.b32.xlu0 %v643, 2
    %v658 = vpop.permute.xlu0 %657
    %v659 = vmul.f32 %v656, 9.0
    %v660 = vmul.f32 %v658, 9.0
    %v661 = vadd.f32 %v653, %v659
    %v662 = vadd.f32 %v654, %v660
    %663 = vrot.lane.b32.xlu0 %v644, 3
    %v664 = vpop.permute.xlu0 %663
    %665 = vrot.lane.b32.xlu0 %v643, 3
    %v666 = vpop.permute.xlu0 %665
    %v667 = vmul.f32 %v664, 3.0
    %v668 = vmul.f32 %v666, 3.0
    %v669 = vadd.f32 %v661, %v667
    %v670 = vadd.f32 %v662, %v668
    %v671 = vrot.slane %v463, 5
    %v672 = vrot.slane %v464, 5
    %v673 = vsel %vm188, %v671, %v672
    %v674 = vsel %vm188, %v672, %v671
    %675 = vrot.lane.b32.xlu0 %v674, 1
    %v676 = vpop.permute.xlu0 %675
    %677 = vrot.lane.b32.xlu0 %v673, 1
    %v678 = vpop.permute.xlu0 %677
    %v679 = vmul.f32 %v676, 3.0
    %v680 = vmul.f32 %v678, 3.0
    %v681 = vadd.f32 %v674, %v679
    %v682 = vadd.f32 %v673, %v680
    %683 = vrot.lane.b32.xlu0 %v674, 2
    %v684 = vpop.permute.xlu0 %683
    %685 = vrot.lane.b32.xlu0 %v673, 2
    %v686 = vpop.permute.xlu0 %685
    %v687 = vmul.f32 %v684, 3.0
    %v688 = vmul.f32 %v686, 3.0
    %v689 = vadd.f32 %v681, %v687
    %v690 = vadd.f32 %v682, %v688
    %691 = vrot.lane.b32.xlu0 %v674, 3
    %v692 = vpop.permute.xlu0 %691
    %693 = vrot.lane.b32.xlu0 %v673, 3
    %v694 = vpop.permute.xlu0 %693
    %v695 = vadd.f32 %v689, %v692
    %v696 = vadd.f32 %v690, %v694
    %v697 = vadd.f32 %v609, %v639
    %v698 = vadd.f32 %v610, %v640
    %v699 = vadd.f32 %v669, %v695
    %v700 = vadd.f32 %v670, %v696
    %v701 = vadd.f32 %v697, %v699
    %v702 = vadd.f32 %v698, %v700
    %v703 = vadd.f32 %v701, %v587
    %v704 = vadd.f32 %v702, %v588
    %v705 = vld [vmem:[#allocation6] sm:$0xff]
    %v706 = vld [vmem:[#allocation6 + $0x8] sm:$0xff]
    %708 = vset.pattern.permute.xlu0 0
    %709 = vperm.xlu0 %708, %v705
    %v710 = vpop.permute.xlu0 %709
    %713 = vset.pattern.permute.xlu0 0
    %714 = vperm.xlu0 %713, %v706
    %v715 = vpop.permute.xlu0 %714
    %v717 = vmul.f32 %v703, %v710
    %v718 = vmul.f32 %v704, %v715
    %v719 = vld [vmem:[%s2] sm:$0x1]
    %v721 = vlaneseq
    %v722 = vshrl.u32 %v721, 7
    %v723 = vsub.s32 0, %v722
    %v724 = vrot.slane %v719, %v723
    %v726 = vmul.f32 %v717, %v724
    %v727 = vmul.f32 %v718, %v724
    %v728 = vadd.f32 %v726, 0.25
    %v729 = vadd.f32 %v727, 0.25
    %730 = vst [vmem:[#allocation7] sm:$0xff] %v728
    %731 = vst [vmem:[#allocation7 + $0x8] sm:$0xff] %v729
    // Predicated region
    $region22: #{fused.1} parent=1 // pred_check
      _
    $region23: #{fused.1} parent=1 // pred_check_branch
      %733 = sbr.rel (0) target = $region25
    $region24: #{fused.1} parent=1 // pred_region
      %s735 = ssub.s32 256, 256
      %736 = vsyncadd [#allocation4], %s735
      %s737 = sshll.u32 [#allocation7], 4
      %s738 = int_to_ptr.vmem [resolvable:$true] %s737
      %743 = dma.vmem_to_hbm [thread:$0]  %s738, 256, %s3, [#allocation4], 128, 128, 8
    $region25: #{fused.1} parent=1 // pred_fallthru
      _
    // Predicated region
    $region26: #{fused.1} parent=1 // pred_check
      _
    $region27: #{fused.1} parent=1 // pred_check_branch
      %745 = sbr.rel (0) target = $region29
    $region28: #{fused.1} parent=1 // pred_region
      %746 = dma.done [#allocation4], 256
    $region29: #{fused.1} parent=1 // pred_fallthru
      _
    %747 = vsyncpa [#allocation3], 1
    %748 = vsyncpa [#allocation4], 1
    %749 = vsyncpa [#allocation5], 1

</llo_original>
